<compile_context>
chip_gen: v6e
topology: v6e:2x2x1
jax: 0.10.0
libtpu: 0.0.40
codegen_flags: <defaults>
</compile_context>

<pallas_src>
import jax
import jax.numpy as jnp
from jax.experimental import pallas as pl
from jax.experimental.pallas import tpu as pltpu

LANE = 128          # lane width; padded output head size (lane-dense store)
NEG_BIG = -1e30     # padded-bias fill; safer than -inf (no inf-inf -> NaN risk)


def _classifier_kernel(x_ref, w1_ref, b1_ref, w2_ref, b2_ref, o_ref):
    # fc1 + ReLU: cast x f32->bf16 on the VPU (free; kernel is HBM-bound), f32 accumulation.
    x = x_ref[...].astype(jnp.bfloat16)                                # (TB, In) bf16
    h = jnp.dot(x, w1_ref[...], preferred_element_type=jnp.float32)    # (TB, H)  f32
    h = jnp.maximum(h + b1_ref[...], 0.0)                              # bias + ReLU in f32
    # fc2 (head padded to LANE output columns; padded W2 columns are zero).
    logits = jnp.dot(h.astype(jnp.bfloat16), w2_ref[...],
                     preferred_element_type=jnp.float32)               # (TB, LANE) f32
    logits = logits + b2_ref[...]                                      # padded cols ~ -1e30
    # Softmax over the class axis; exp(-1e30 - m) underflows to 0, so padded lanes
    # contribute nothing to the denominator.
    m = jnp.max(logits, axis=-1, keepdims=True)
    e = jnp.exp(logits - m)
    denom = jnp.sum(e, axis=-1, keepdims=True)
    o_ref[...] = (e * pl.reciprocal(denom, approx=True)).astype(o_ref.dtype)


def _round_up(x, m):
    return ((x + m - 1) // m) * m


def _choose_tile_b(B, max_tile=512):
    # Big tiles to beat per-step overhead, but keep >=2 tiles so v7x's second TC has work;
    # rows kept a multiple of 8 (sublane granularity).
    return max(8, min(max_tile, _round_up(pl.cdiv(B, 2), 8)))


def code_classifier_forward(x, w1_t, b1, w2_t, b2, *, max_tile_b=512):
    """x: (B, In) f32; w1_t: (In, H); b1: (1, H); w2_t: (H, O); b2: (1, O). Returns (B, O) f32."""
    B, In = x.shape
    H = w1_t.shape[1]
    O = w2_t.shape[1]

    tile_b = _choose_tile_b(B, max_tile_b)
    num_tiles = pl.cdiv(B, tile_b)   # last tile may be partial; no wrapper padding pass

    # bf16 MXU operands for the (tiny, resident) weights; biases stay f32.
    x_f32 = x.astype(jnp.float32)
    w1_bf = w1_t.astype(jnp.bfloat16)
    b1_f32 = b1.reshape(1, H).astype(jnp.float32)

    # Lane-dense padded head: zero weight columns, ~-inf (finite) bias beyond O.
    # TODO(synk): benchmark an 8-lane head (out block (tile_b, 8)) vs this lane-dense one.
    w2_pad = jnp.zeros((H, LANE), jnp.bfloat16).at[:, :O].set(w2_t.astype(jnp.bfloat16))
    b2_pad = jnp.full((1, LANE), NEG_BIG, jnp.float32).at[:, :O].set(
        b2.reshape(1, O).astype(jnp.float32))

    out = pl.pallas_call(
        _classifier_kernel,
        out_shape=jax.ShapeDtypeStruct((B, LANE), jnp.bfloat16),
        grid=(num_tiles,),
        in_specs=[
            pl.BlockSpec((tile_b, In), lambda i: (i, 0)),   # x: f32, tiled over batch
            pl.BlockSpec((In, H), lambda i: (0, 0)),        # W1: resident
            pl.BlockSpec((1, H), lambda i: (0, 0)),         # b1: resident
            pl.BlockSpec((H, LANE), lambda i: (0, 0)),      # W2 (padded): resident
            pl.BlockSpec((1, LANE), lambda i: (0, 0)),      # b2 (padded): resident
        ],
        out_specs=pl.BlockSpec((tile_b, LANE), lambda i: (i, 0)),
        compiler_params=pltpu.CompilerParams(
            dimension_semantics=("parallel",)),             # shard batch tiles across TCs (v7x)
    )(x_f32, w1_bf, b1_f32, w2_pad, b2_pad)

    return out[:B, :O].astype(jnp.float32)


def make_params(key, input_size=256, hidden_size=128, output_size=2):
    """Deterministic synthetic parameters (PyTorch-like uniform init ranges)."""
    k1, k2, k3, k4 = jax.random.split(key, 4)
    bound1 = 1.0 / (input_size ** 0.5)
    bound2 = 1.0 / (hidden_size ** 0.5)
    # stored already transposed: (in, out)
    w1_t = jax.random.uniform(k1, (input_size, hidden_size), jnp.float32, -bound1, bound1)
    b1 = jax.random.uniform(k2, (1, hidden_size), jnp.float32, -bound1, bound1)
    w2_t = jax.random.uniform(k3, (hidden_size, output_size), jnp.float32, -bound2, bound2)
    b2 = jax.random.uniform(k4, (1, output_size), jnp.float32, -bound2, bound2)
    return w1_t, b1, w2_t, b2


if __name__ == "__main__":
    key = jax.random.PRNGKey(0)
    kx, kp = jax.random.split(key)

    # Module defaults (In=256, H=128, O=2); batch chosen so the grid has 2 tiles
    # and the second one is partial (exercises the no-pad / masked-tail path).
    batch, input_size, hidden_size, output_size = 200, 256, 128, 2
    x = jax.random.normal(kx, (batch, input_size), jnp.float32)
    w1_t, b1, w2_t, b2 = make_params(kp, input_size, hidden_size, output_size)

    out = code_classifier_forward(x, w1_t, b1, w2_t, b2)
    out = jax.block_until_ready(out)

    # sanity check against plain-JAX f32 reference (bf16 matmuls / bf16 output -> loosened tol)
    h_ref = jnp.maximum(x @ w1_t + b1, 0.0)
    logits_ref = h_ref @ w2_t + b2
    ref = jax.nn.softmax(logits_ref, axis=1)
    assert out.shape == (batch, output_size)
    assert bool(jnp.all(jnp.isfinite(out)))
    assert jnp.allclose(out, ref, atol=3e-2), "mismatch vs reference"
    assert jnp.allclose(jnp.sum(out, axis=1), 1.0, atol=2e-2)

    print("KERNEL_OK")
</pallas_src>

<mosaic_0001>
module attributes {stable_mosaic.version = 11 : i64} {
  func.func @_classifier_kernel(%arg0: i32, %arg1: memref<104x256xf32, #tpu.memory_space<vmem>>, %arg2: memref<256x128xbf16, #tpu.memory_space<vmem>>, %arg3: memref<1x128xf32, #tpu.memory_space<vmem>>, %arg4: memref<128x128xbf16, #tpu.memory_space<vmem>>, %arg5: memref<1x128xf32, #tpu.memory_space<vmem>>, %arg6: memref<104x128xbf16, #tpu.memory_space<vmem>>) attributes {dimension_semantics = [#tpu.dimension_semantics<parallel>], iteration_bounds = array<i64: 2>, scalar_prefetch = 0 : i64, scratch_operands = 0 : i64, tpu.core_type = #tpu.core_type<tc>, window_params = [{transform_indices = @transform_0, window_bounds = array<i64: 104, 256>}, {pipeline_mode = #tpu.pipeline_mode<synchronous>, transform_indices = @transform_1, window_bounds = array<i64: 256, 128>}, {pipeline_mode = #tpu.pipeline_mode<synchronous>, transform_indices = @transform_2, window_bounds = array<i64: 1, 128>}, {pipeline_mode = #tpu.pipeline_mode<synchronous>, transform_indices = @transform_3, window_bounds = array<i64: 128, 128>}, {pipeline_mode = #tpu.pipeline_mode<synchronous>, transform_indices = @transform_4, window_bounds = array<i64: 1, 128>}, {transform_indices = @transform_5, window_bounds = array<i64: 104, 128>}]} {
    %c0 = arith.constant 0 : index
    %c0_0 = arith.constant 0 : index
    %0 = vector.load %arg1[%c0, %c0_0] : memref<104x256xf32, #tpu.memory_space<vmem>>, vector<104x256xf32>
    %1 = arith.truncf %0 : vector<104x256xf32> to vector<104x256xbf16>
    %c0_1 = arith.constant 0 : index
    %c0_2 = arith.constant 0 : index
    %2 = vector.load %arg2[%c0_1, %c0_2] : memref<256x128xbf16, #tpu.memory_space<vmem>>, vector<256x128xbf16>
    %cst = arith.constant dense<0.000000e+00> : vector<104x128xf32>
    %3 = tpu.matmul %1, %2, %cst {dimension_numbers = #tpu.dot_dimension_numbers<[1], [0], [0], [1], [0, 0, 1, 1], [], []>} : vector<104x256xbf16>, vector<256x128xbf16>, vector<104x128xf32> -> vector<104x128xf32>
    %c0_3 = arith.constant 0 : index
    %c0_4 = arith.constant 0 : index
    %4 = vector.load %arg3[%c0_3, %c0_4] : memref<1x128xf32, #tpu.memory_space<vmem>>, vector<1x128xf32>
    %5 = vector.broadcast %4 : vector<1x128xf32> to vector<104x128xf32>
    %6 = arith.addf %3, %5 : vector<104x128xf32>
    %cst_5 = arith.constant 0.000000e+00 : f32
    %7 = vector.broadcast %cst_5 : f32 to vector<104x128xf32>
    %8 = arith.maximumf %6, %7 : vector<104x128xf32>
    %9 = arith.truncf %8 : vector<104x128xf32> to vector<104x128xbf16>
    %c0_6 = arith.constant 0 : index
    %c0_7 = arith.constant 0 : index
    %10 = vector.load %arg4[%c0_6, %c0_7] : memref<128x128xbf16, #tpu.memory_space<vmem>>, vector<128x128xbf16>
    %cst_8 = arith.constant dense<0.000000e+00> : vector<104x128xf32>
    %11 = tpu.matmul %9, %10, %cst_8 {dimension_numbers = #tpu.dot_dimension_numbers<[1], [0], [0], [1], [0, 0, 1, 1], [], []>} : vector<104x128xbf16>, vector<128x128xbf16>, vector<104x128xf32> -> vector<104x128xf32>
    %c0_9 = arith.constant 0 : index
    %c0_10 = arith.constant 0 : index
    %12 = vector.load %arg5[%c0_9, %c0_10] : memref<1x128xf32, #tpu.memory_space<vmem>>, vector<1x128xf32>
    %13 = vector.broadcast %12 : vector<1x128xf32> to vector<104x128xf32>
    %14 = arith.addf %11, %13 : vector<104x128xf32>
    %cst_11 = arith.constant dense<0xFF800000> : vector<104xf32>
    %15 = vector.multi_reduction <maximumf>, %14, %cst_11 [1] : vector<104x128xf32> to vector<104xf32>
    %16 = vector.shape_cast %15 : vector<104xf32> to vector<104x1xf32>
    %17 = vector.broadcast %16 : vector<104x1xf32> to vector<104x128xf32>
    %18 = arith.subf %14, %17 : vector<104x128xf32>
    %19 = math.exp %18 : vector<104x128xf32>
    %cst_12 = arith.constant dense<0.000000e+00> : vector<104xf32>
    %20 = vector.multi_reduction <add>, %19, %cst_12 [1] : vector<104x128xf32> to vector<104xf32>
    %21 = vector.shape_cast %20 : vector<104xf32> to vector<104x1xf32>
    %22 = tpu.reciprocal %21 {approx = true} : vector<104x1xf32> -> vector<104x1xf32>
    %23 = vector.broadcast %22 : vector<104x1xf32> to vector<104x128xf32>
    %24 = arith.mulf %19, %23 : vector<104x128xf32>
    %25 = arith.truncf %24 : vector<104x128xf32> to vector<104x128xbf16>
    %c0_13 = arith.constant 0 : index
    %c0_14 = arith.constant 0 : index
    %26 = vector.load %arg6[%c0_13, %c0_14] : memref<104x128xbf16, #tpu.memory_space<vmem>>, vector<104x128xbf16>
    tpu.vector_store %arg6[%c0_13, %c0_14], %25 {strides = array<i32>} : memref<104x128xbf16, #tpu.memory_space<vmem>>, vector<104x128xbf16>,
    return
  }
  func.func @transform_0(%arg0: i32) -> (i32, i32) {
    %c0_i32 = arith.constant 0 : i32
    %c0_i32_0 = arith.constant 0 : i32
    return %arg0, %c0_i32 : i32, i32
  }
  func.func @transform_1(%arg0: i32) -> (i32, i32) {
    %c0_i32 = arith.constant 0 : i32
    %c0_i32_0 = arith.constant 0 : i32
    %c0_i32_1 = arith.constant 0 : i32
    return %c0_i32, %c0_i32_0 : i32, i32
  }
  func.func @transform_2(%arg0: i32) -> (i32, i32) {
    %c0_i32 = arith.constant 0 : i32
    %c0_i32_0 = arith.constant 0 : i32
    %c0_i32_1 = arith.constant 0 : i32
    return %c0_i32, %c0_i32_0 : i32, i32
  }
  func.func @transform_3(%arg0: i32) -> (i32, i32) {
    %c0_i32 = arith.constant 0 : i32
    %c0_i32_0 = arith.constant 0 : i32
    %c0_i32_1 = arith.constant 0 : i32
    return %c0_i32, %c0_i32_0 : i32, i32
  }
  func.func @transform_4(%arg0: i32) -> (i32, i32) {
    %c0_i32 = arith.constant 0 : i32
    %c0_i32_0 = arith.constant 0 : i32
    %c0_i32_1 = arith.constant 0 : i32
    return %c0_i32, %c0_i32_0 : i32, i32
  }
  func.func @transform_5(%arg0: i32) -> (i32, i32) {
    %c0_i32 = arith.constant 0 : i32
    %c0_i32_0 = arith.constant 0 : i32
    return %arg0, %c0_i32 : i32, i32
  }
}

</mosaic_0001>

<llo_original>
// kernel: tpu_custom_call.1
$region0: #{tpu_custom_call.1}
  #allocation0 [shape = 'u32[]', space=smem, size = 0x4, offset = 0x4, fixed_abs, tag = 'smem constant byte address 0x4 - core index']
  #allocation1 [shape = 'u32[144,128]{1,0:T(1,128)}', space=vmem, size = 0x12000, scoped, tag = 'internal scratch']
  %s0 = inlined_call_operand.hbm [shape: f32[200,256], index: 0, kind: input, shape index: {}]
  %s1 = inlined_call_operand.hbm [shape: bf16[256,128], index: 1, kind: input, shape index: {}]
  %s2 = inlined_call_operand.vmem [shape: f32[1,128], index: 2, kind: input, shape index: {}]
  %s3 = inlined_call_operand.hbm [shape: bf16[128,128], index: 3, kind: input, shape index: {}]
  %s4 = inlined_call_operand.vmem [shape: f32[1,128], index: 4, kind: input, shape index: {}]
  %s5 = inlined_call_operand.hbm [shape: bf16[200,128], index: 5, kind: output, shape index: {}]
  %s6 = sld [smem:[#allocation0]]
  $region65: #{tpu_custom_call.1} parent=0
    _
  %s8 = ssub.s32 1, %s6
  %s9 = scalar_select 0, %s8, %s6
  $region1: #{tpu_custom_call.1} parent=0
    #allocation2 [shape = 'u8[212992]{0}', space=vmem, size = 0x34000, scoped, tag = 'input window, operand 0']
    #allocation3 [shape = 's32[2]{0}', space=sflag, size = 0x8, scoped, tag = 'scoped memory for tpu_custom_call.1']
    #allocation4 [shape = 's32[2]{0}', space=sflag, size = 0x8, scoped, tag = 'scoped memory for tpu_custom_call.1']
    #allocation5 [shape = 'u8[65536]{0}', space=vmem, size = 0x10000, scoped, tag = 'input window, operand 1, single buffered']
    #allocation6 [shape = 's32[1]{0}', space=sflag, size = 0x4, scoped, tag = 'scoped memory for tpu_custom_call.1']
    #allocation7 [shape = 'u8[32768]{0}', space=vmem, size = 0x8000, scoped, tag = 'input window, operand 3, single buffered']
    #allocation8 [shape = 'u8[53248]{0}', space=vmem, size = 0xd000, scoped, tag = 'output window, operand 0']
    %10 = vsyncpa [#allocation3], 0
    %s11 = scalar_lea.sflag [#allocation3], 1
    %12 = vsyncpa %s11, 0
    %13 = vsyncpa [#allocation6], 0
    %14 = vsyncpa [#allocation4], 0
    %s15 = scalar_lea.sflag [#allocation4], 1
    %16 = vsyncpa %s15, 0
    loop: start=0, step=1, limit=4
    $region2: #{tpu_custom_call.1} parent=1 // loop_pre_header
      _
    $region3: #{tpu_custom_call.1} parent=1 // loop_header
      %s18 = sphi 0, %s22
      %p19 = scmp.ge.s32.totalorder %s18, 4
      %s28 = sphi 0, %s30
      %s31 = sphi 0, %s28
      %s32 = sphi 0, %s31
      %s48 = sphi 0, %s32
      %s52 = sphi 0, %s52
      %s54 = sphi 0, %s52
      %s55 = sphi 0, %s54
      %s69 = sphi 0, %s55
      %s73 = sphi 0, %s73
      %s75 = sphi 0, %s73
      %s76 = sphi 0, %s75
      %s90 = sphi 0, %s76
      %s94 = sphi 0, %s94
      %s96 = sphi 0, %s94
      %s97 = sphi 0, %s96
      %s111 = sphi 0, %s97
      %s115 = sphi 0, %s115
      %s117 = sphi 0, %s115
      %s118 = sphi 0, %s117
      %s132 = sphi 0, %s118
      %s138 = sphi 0, %s140
      %s141 = sphi 0, %s138
      %s142 = sphi 0, %s141
      %s158 = sphi 0, %s142
    $region4: #{tpu_custom_call.1} parent=1 // loop_header_branch
      %21 = sbr.rel (%p19) target = $region8
    $region5: #{tpu_custom_call.1} parent=1 // loop_body
      %s23 = ssub.s32 %s18, 1
      %s24 = ssub.s32 %s18, 2
      %s25 = sadd.s32 %s18, 1
      %s26 = ssub.s32 %s18, %s25
      %p27 = scmp.eq.s32.totalorder %s26, 0
      %s29 = sadd.s32 %s28, 1
      %s30 = scalar_select %p27, %s28, %s29
      %p33 = pneg %p27
      %p34 = scmp.eq.s32.totalorder %s18, 1
      %p35 = por %p33, %p34
      %p36 = scmp.ne.s32.totalorder %s28, %s31
      %p37 = scmp.eq.s32.totalorder %s18, 0
      %p38 = por %p36, %p37
      %p39 = scmp.ne.s32.totalorder %s28, %s31
      %p40 = scmp.eq.s32.totalorder %s23, 1
      %p41 = por %p39, %p40
      %p42 = scmp.ne.s32.totalorder %s31, %s32
      %p43 = scmp.eq.s32.totalorder %s23, 0
      %p44 = por %p42, %p43
      %p45 = scmp.ne.s32.totalorder %s31, %s32
      %p46 = scmp.eq.s32.totalorder %s24, 1
      %p47 = por %p45, %p46
      %p49 = scmp.ne.s32.totalorder %s32, %s48
      %p50 = scmp.eq.s32.totalorder %s24, 0
      %p51 = por %p49, %p50
      %s53 = sadd.s32 %s52, 1
      %p56 = scmp.eq.s32.totalorder %s18, 1
      %p57 = scmp.ne.s32.totalorder %s52, %s54
      %p58 = scmp.eq.s32.totalorder %s18, 0
      %p59 = por %p57, %p58
      %p60 = scmp.ne.s32.totalorder %s52, %s54
      %p61 = scmp.eq.s32.totalorder %s23, 1
      %p62 = por %p60, %p61
      %p63 = scmp.ne.s32.totalorder %s54, %s55
      %p64 = scmp.eq.s32.totalorder %s23, 0
      %p65 = por %p63, %p64
      %p66 = scmp.ne.s32.totalorder %s54, %s55
      %p67 = scmp.eq.s32.totalorder %s24, 1
      %p68 = por %p66, %p67
      %p70 = scmp.ne.s32.totalorder %s55, %s69
      %p71 = scmp.eq.s32.totalorder %s24, 0
      %p72 = por %p70, %p71
      %s74 = sadd.s32 %s73, 1
      %p77 = scmp.eq.s32.totalorder %s18, 1
      %p78 = scmp.ne.s32.totalorder %s73, %s75
      %p79 = scmp.eq.s32.totalorder %s18, 0
      %p80 = por %p78, %p79
      %p81 = scmp.ne.s32.totalorder %s73, %s75
      %p82 = scmp.eq.s32.totalorder %s23, 1
      %p83 = por %p81, %p82
      %p84 = scmp.ne.s32.totalorder %s75, %s76
      %p85 = scmp.eq.s32.totalorder %s23, 0
      %p86 = por %p84, %p85
      %p87 = scmp.ne.s32.totalorder %s75, %s76
      %p88 = scmp.eq.s32.totalorder %s24, 1
      %p89 = por %p87, %p88
      %p91 = scmp.ne.s32.totalorder %s76, %s90
      %p92 = scmp.eq.s32.totalorder %s24, 0
      %p93 = por %p91, %p92
      %s95 = sadd.s32 %s94, 1
      %p98 = scmp.eq.s32.totalorder %s18, 1
      %p99 = scmp.ne.s32.totalorder %s94, %s96
      %p100 = scmp.eq.s32.totalorder %s18, 0
      %p101 = por %p99, %p100
      %p102 = scmp.ne.s32.totalorder %s94, %s96
      %p103 = scmp.eq.s32.totalorder %s23, 1
      %p104 = por %p102, %p103
      %p105 = scmp.ne.s32.totalorder %s96, %s97
      %p106 = scmp.eq.s32.totalorder %s23, 0
      %p107 = por %p105, %p106
      %p108 = scmp.ne.s32.totalorder %s96, %s97
      %p109 = scmp.eq.s32.totalorder %s24, 1
      %p110 = por %p108, %p109
      %p112 = scmp.ne.s32.totalorder %s97, %s111
      %p113 = scmp.eq.s32.totalorder %s24, 0
      %p114 = por %p112, %p113
      %s116 = sadd.s32 %s115, 1
      %p119 = scmp.eq.s32.totalorder %s18, 1
      %p120 = scmp.ne.s32.totalorder %s115, %s117
      %p121 = scmp.eq.s32.totalorder %s18, 0
      %p122 = por %p120, %p121
      %p123 = scmp.ne.s32.totalorder %s115, %s117
      %p124 = scmp.eq.s32.totalorder %s23, 1
      %p125 = por %p123, %p124
      %p126 = scmp.ne.s32.totalorder %s117, %s118
      %p127 = scmp.eq.s32.totalorder %s23, 0
      %p128 = por %p126, %p127
      %p129 = scmp.ne.s32.totalorder %s117, %s118
      %p130 = scmp.eq.s32.totalorder %s24, 1
      %p131 = por %p129, %p130
      %p133 = scmp.ne.s32.totalorder %s118, %s132
      %p134 = scmp.eq.s32.totalorder %s24, 0
      %p135 = por %p133, %p134
      %s136 = ssub.s32 %s18, %s25
      %p137 = scmp.eq.s32.totalorder %s136, 0
      %s139 = sadd.s32 %s138, 1
      %s140 = scalar_select %p137, %s138, %s139
      %p143 = pneg %p137
      %p144 = scmp.eq.s32.totalorder %s18, 1
      %p145 = por %p143, %p144
      %p146 = scmp.ne.s32.totalorder %s138, %s141
      %p147 = scmp.eq.s32.totalorder %s18, 0
      %p148 = por %p146, %p147
      %p149 = scmp.ne.s32.totalorder %s138, %s141
      %p150 = scmp.eq.s32.totalorder %s23, 1
      %p151 = por %p149, %p150
      %p152 = scmp.ne.s32.totalorder %s141, %s142
      %p153 = scmp.eq.s32.totalorder %s23, 0
      %p154 = por %p152, %p153
      %p155 = scmp.ne.s32.totalorder %s141, %s142
      %p156 = scmp.eq.s32.totalorder %s24, 1
      %p157 = por %p155, %p156
      %p159 = scmp.ne.s32.totalorder %s142, %s158
      %p160 = scmp.eq.s32.totalorder %s24, 0
      %p161 = por %p159, %p160
      %p162 = scmp.le.s32.totalorder 1, %s18
      %p163 = scmp.lt.s32.totalorder %s18, 3
      %p164 = pnand %p162, %p163
      %p165 = pneg %p164
      // Predicated region
      $region9: #{tpu_custom_call.1} parent=5 // pred_check
        _
      $region10: #{tpu_custom_call.1} parent=5 // pred_check_branch
        %167 = sbr.rel (%p164) target = $region12
      $region11: #{tpu_custom_call.1} parent=5 // pred_region
        %s168 = ssub.s32 %s18, 1
        // Predicated region
        $region13: #{tpu_custom_call.1} parent=11 // pred_check
          %p169 = pneg %p65
        $region14: #{tpu_custom_call.1} parent=11 // pred_check_branch
          %171 = sbr.rel (%p169) target = $region16
        $region15: #{tpu_custom_call.1} parent=11 // pred_region
          %s173 = ssub.s32 2048, 2048
          %174 = vsyncadd [#allocation6], %s173
          %s175 = sshll.u32 [#allocation5], 4
          %s176 = int_to_ptr.vmem [resolvable:$true] %s175
          %181 = dma.hbm_to_vmem [thread:$0]  %s1, 2048, %s176, [#allocation6], 64, 64, 4
        $region16: #{tpu_custom_call.1} parent=11 // pred_fallthru
          _
        // Predicated region
        $region17: #{tpu_custom_call.1} parent=11 // pred_check
          %p182 = pneg %p86
        $region18: #{tpu_custom_call.1} parent=11 // pred_check_branch
          %184 = sbr.rel (%p182) target = $region20
        $region19: #{tpu_custom_call.1} parent=11 // pred_region
          _
        $region20: #{tpu_custom_call.1} parent=11 // pred_fallthru
          _
        // Predicated region
        $region21: #{tpu_custom_call.1} parent=11 // pred_check
          %p185 = pneg %p107
        $region22: #{tpu_custom_call.1} parent=11 // pred_check_branch
          %187 = sbr.rel (%p185) target = $region24
        $region23: #{tpu_custom_call.1} parent=11 // pred_region
          %s189 = ssub.s32 1024, 1024
          %190 = vsyncadd [#allocation6], %s189
          %s191 = sshll.u32 [#allocation7], 4
          %s192 = int_to_ptr.vmem [resolvable:$true] %s191
          %197 = dma.hbm_to_vmem [thread:$0]  %s3, 1024, %s192, [#allocation6], 64, 64, 4
        $region24: #{tpu_custom_call.1} parent=11 // pred_fallthru
          _
        // Predicated region
        $region25: #{tpu_custom_call.1} parent=11 // pred_check
          %p198 = pneg %p128
        $region26: #{tpu_custom_call.1} parent=11 // pred_check_branch
          %200 = sbr.rel (%p198) target = $region28
        $region27: #{tpu_custom_call.1} parent=11 // pred_region
          _
        $region28: #{tpu_custom_call.1} parent=11 // pred_fallthru
          _
      $region12: #{tpu_custom_call.1} parent=5 // pred_fallthru
        _
      %p201 = scmp.lt.s32.totalorder %s18, 2
      // Predicated region
      $region29: #{tpu_custom_call.1} parent=5 // pred_check
        %p202 = pneg %p201
      $region30: #{tpu_custom_call.1} parent=5 // pred_check_branch
        %204 = sbr.rel (%p202) target = $region32
      $region31: #{tpu_custom_call.1} parent=5 // pred_region
        // Predicated region
        $region33: #{tpu_custom_call.1} parent=31 // pred_check
          %p205 = pneg %p38
        $region34: #{tpu_custom_call.1} parent=31 // pred_check_branch
          %207 = sbr.rel (%p205) target = $region36
        $region35: #{tpu_custom_call.1} parent=31 // pred_region
          %s208 = sand.u32 %s28, 1
          %s209 = scalar_lea.sflag [#allocation3], %s208
          %s210 = sand.u32 %s28, 1
          %s211 = smul.addr %s210, 208
          %s212 = scalar_lea.vmem [#allocation2], %s211
          %s213 = smul.u32 13, %s18
          %s214 = ssub.s32 25, %s213
          %p215 = scmp.lt.s32.totalorder %s214, 13
          %s216 = scalar_select %p215, %s214, 13
          %s217 = smul.u32 128, %s216
          %s218 = smul.u32 %s217, 2
          %s220 = ssub.s32 3328, %s218
          %221 = vsyncadd %s209, %s220
          %p222 = scmp.ne.s32.totalorder 0, %s218
          %s223 = smul.addr %s213, 2
          %s224 = smul.addr %s223, 128
          %s225 = scalar_lea.hbm %s0, %s224
          %s226 = smul.u32 16, %s216
          %s227 = sshll.u32 %s212, 4
          %s228 = int_to_ptr.vmem [resolvable:$true] %s227
          %s229 = sshll.u32 %s226, 4
          %233 = dma.hbm_to_vmem [thread:$0]  (%p222), %s225, %s229, %s228, %s209, 256, 256, 16
        $region36: #{tpu_custom_call.1} parent=31 // pred_fallthru
          _
      $region32: #{tpu_custom_call.1} parent=5 // pred_fallthru
        _
      %p234 = scmp.le.s32.totalorder 1, %s18
      %p235 = scmp.lt.s32.totalorder %s18, 3
      %p236 = pnand %p234, %p235
      %p237 = pneg %p236
      // Predicated region
      $region37: #{tpu_custom_call.1} parent=5 // pred_check
        _
      $region38: #{tpu_custom_call.1} parent=5 // pred_check_branch
        %239 = sbr.rel (%p236) target = $region40
      $region39: #{tpu_custom_call.1} parent=5 // pred_region
        %s240 = ssub.s32 %s18, 1
        %s241 = sand.u32 %s31, 1
        %s242 = scalar_lea.sflag [#allocation3], %s241
        %s243 = sand.u32 %s31, 1
        %s244 = smul.addr %s243, 208
        %s245 = scalar_lea.vmem [#allocation2], %s244
        // Predicated region
        $region41: #{tpu_custom_call.1} parent=39 // pred_check
          %p246 = pneg %p44
        $region42: #{tpu_custom_call.1} parent=39 // pred_check_branch
          %248 = sbr.rel (%p246) target = $region44
        $region43: #{tpu_custom_call.1} parent=39 // pred_region
          %249 = dma.done %s242, 3328
        $region44: #{tpu_custom_call.1} parent=39 // pred_fallthru
          _
        // Predicated region
        $region45: #{tpu_custom_call.1} parent=39 // pred_check
          %p250 = pneg %p65
        $region46: #{tpu_custom_call.1} parent=39 // pred_check_branch
          %252 = sbr.rel (%p250) target = $region48
        $region47: #{tpu_custom_call.1} parent=39 // pred_region
          %253 = dma.done [#allocation6], 2048
        $region48: #{tpu_custom_call.1} parent=39 // pred_fallthru
          _
        // Predicated region
        $region49: #{tpu_custom_call.1} parent=39 // pred_check
          %p254 = pneg %p107
        $region50: #{tpu_custom_call.1} parent=39 // pred_check_branch
          %256 = sbr.rel (%p254) target = $region52
        $region51: #{tpu_custom_call.1} parent=39 // pred_region
          %257 = dma.done [#allocation6], 1024
        $region52: #{tpu_custom_call.1} parent=39 // pred_fallthru
          _
        %s258 = sand.u32 %s31, 1
        %s259 = scalar_lea.sflag [#allocation3], %s258
        %s260 = sand.u32 %s31, 1
        %s261 = smul.addr %s260, 208
        %s262 = scalar_lea.vmem [#allocation2], %s261
        %p263 = pneg %p44
        %p264 = pneg %p41
        %p265 = pneg %p65
        %p266 = pneg %p62
        %p267 = pneg %p86
        %p268 = pneg %p83
        %p269 = pneg %p107
        %p270 = pneg %p104
        %p271 = pneg %p128
        %p272 = pneg %p125
        %p273 = pneg %p154
        %p274 = pneg %p151
        %s275 = sand.u32 %s141, 1
        %s276 = scalar_lea.sflag [#allocation4], %s275
        %s277 = sand.u32 %s141, 1
        %s278 = smul.addr %s277, 52
        %s279 = scalar_lea.vmem [#allocation8], %s278
        %s280 = smul.u32 13, %s23
        %s281 = ssub.s32 25, %s280
        %p282 = scmp.lt.s32.totalorder %s281, 13
        %s283 = scalar_select %p282, %s281, 13
        %s284 = smul.u32 128, %s283
        %s285 = smul.u32 %s284, 2
        %s286 = smul.u32 13, %s23
        %s287 = ssub.s32 25, %s286
        %p288 = scmp.lt.s32.totalorder %s287, 13
        %s289 = scalar_select %p288, %s287, 13
        %s290 = smul.u32 64, %s289
        %v292 = vld [vmem:[%s245] sm:$0xff]
        %v293 = vld [vmem:[%s245 + $0x8] sm:$0xff]
        %v294 = vld [vmem:[%s245 + $0x10] sm:$0xff]
        %v295 = vld [vmem:[%s245 + $0x18] sm:$0xff]
        %v296 = vld [vmem:[%s245 + $0x20] sm:$0xff]
        %v297 = vld [vmem:[%s245 + $0x28] sm:$0xff]
        %v298 = vld [vmem:[%s245 + $0x30] sm:$0xff]
        %v299 = vld [vmem:[%s245 + $0x38] sm:$0xff]
        %v300 = vld [vmem:[%s245 + $0x40] sm:$0xff]
        %v301 = vld [vmem:[%s245 + $0x48] sm:$0xff]
        %v302 = vld [vmem:[%s245 + $0x50] sm:$0xff]
        %v303 = vld [vmem:[%s245 + $0x58] sm:$0xff]
        %v304 = vld [vmem:[%s245 + $0x60] sm:$0xff]
        %v305 = vld [vmem:[%s245 + $0x68] sm:$0xff]
        %v306 = vld [vmem:[%s245 + $0x70] sm:$0xff]
        %v307 = vld [vmem:[%s245 + $0x78] sm:$0xff]
        %v308 = vld [vmem:[%s245 + $0x80] sm:$0xff]
        %v309 = vld [vmem:[%s245 + $0x88] sm:$0xff]
        %v310 = vld [vmem:[%s245 + $0x90] sm:$0xff]
        %v311 = vld [vmem:[%s245 + $0x98] sm:$0xff]
        %v312 = vld [vmem:[%s245 + $0xa0] sm:$0xff]
        %v313 = vld [vmem:[%s245 + $0xa8] sm:$0xff]
        %v314 = vld [vmem:[%s245 + $0xb0] sm:$0xff]
        %v315 = vld [vmem:[%s245 + $0xb8] sm:$0xff]
        %v316 = vld [vmem:[%s245 + $0xc0] sm:$0xff]
        %v317 = vld [vmem:[%s245 + $0xc8] sm:$0xff]
        %v318 = vpack.c.bf16 %v294, %v292
        %v319 = vpack.c.bf16 %v295, %v293
        %v320 = vpack.c.bf16 %v298, %v296
        %v321 = vpack.c.bf16 %v299, %v297
        %v322 = vpack.c.bf16 %v302, %v300
        %v323 = vpack.c.bf16 %v303, %v301
        %v324 = vpack.c.bf16 %v306, %v304
        %v325 = vpack.c.bf16 %v307, %v305
        %v326 = vpack.c.bf16 %v310, %v308
        %v327 = vpack.c.bf16 %v311, %v309
        %v328 = vpack.c.bf16 %v314, %v312
        %v329 = vpack.c.bf16 %v315, %v313
        %v330 = vpack.c.bf16 %v316, %v316
        %v331 = vpack.c.bf16 %v317, %v317
        %v332 = vld [vmem:[#allocation5] sm:$0xf]
        %v333 = vld [vmem:[#allocation5 + $0x4] sm:$0xf]
        %v334 = vld [vmem:[#allocation5 + $0x8] sm:$0xf]
        %v335 = vld [vmem:[#allocation5 + $0xc] sm:$0xf]
        %v336 = vld [vmem:[#allocation5 + $0x10] sm:$0xf]
        %v337 = vld [vmem:[#allocation5 + $0x14] sm:$0xf]
        %v338 = vld [vmem:[#allocation5 + $0x18] sm:$0xf]
        %v339 = vld [vmem:[#allocation5 + $0x1c] sm:$0xf]
        %v340 = vld [vmem:[#allocation5 + $0x20] sm:$0xf]
        %v341 = vld [vmem:[#allocation5 + $0x24] sm:$0xf]
        %v342 = vld [vmem:[#allocation5 + $0x28] sm:$0xf]
        %v343 = vld [vmem:[#allocation5 + $0x2c] sm:$0xf]
        %v344 = vld [vmem:[#allocation5 + $0x30] sm:$0xf]
        %v345 = vld [vmem:[#allocation5 + $0x34] sm:$0xf]
        %v346 = vld [vmem:[#allocation5 + $0x38] sm:$0xf]
        %v347 = vld [vmem:[#allocation5 + $0x3c] sm:$0xf]
        %v348 = vld [vmem:[#allocation5 + $0x40] sm:$0xf]
        %v349 = vld [vmem:[#allocation5 + $0x44] sm:$0xf]
        %v350 = vld [vmem:[#allocation5 + $0x48] sm:$0xf]
        %v351 = vld [vmem:[#allocation5 + $0x4c] sm:$0xf]
        %v352 = vld [vmem:[#allocation5 + $0x50] sm:$0xf]
        %v353 = vld [vmem:[#allocation5 + $0x54] sm:$0xf]
        %v354 = vld [vmem:[#allocation5 + $0x58] sm:$0xf]
        %v355 = vld [vmem:[#allocation5 + $0x5c] sm:$0xf]
        %v356 = vld [vmem:[#allocation5 + $0x60] sm:$0xf]
        %v357 = vld [vmem:[#allocation5 + $0x64] sm:$0xf]
        %v358 = vld [vmem:[#allocation5 + $0x68] sm:$0xf]
        %v359 = vld [vmem:[#allocation5 + $0x6c] sm:$0xf]
        %v360 = vld [vmem:[#allocation5 + $0x70] sm:$0xf]
        %v361 = vld [vmem:[#allocation5 + $0x74] sm:$0xf]
        %v362 = vld [vmem:[#allocation5 + $0x78] sm:$0xf]
        %v363 = vld [vmem:[#allocation5 + $0x7c] sm:$0xf]
        %v364 = vld [vmem:[%s2] sm:$0x1]
        %v366 = vlaneseq
        %v367 = vshrl.u32 %v366, 7
        %v368 = vsub.s32 0, %v367
        %v369 = vrot.slane %v364, %v368
        %v403 = vunpack.c.l.b16 %v332
        %v404 = vunpack.c.l.b16 %v333
        %v405 = vunpack.c.l.b16 %v334
        %v406 = vunpack.c.l.b16 %v335
        %v407 = vunpack.c.l.b16 %v336
        %v408 = vunpack.c.l.b16 %v337
        %v409 = vunpack.c.l.b16 %v338
        %v410 = vunpack.c.l.b16 %v339
        %v411 = vunpack.c.l.b16 %v340
        %v412 = vunpack.c.l.b16 %v341
        %v413 = vunpack.c.l.b16 %v342
        %v414 = vunpack.c.l.b16 %v343
        %v415 = vunpack.c.l.b16 %v344
        %v416 = vunpack.c.l.b16 %v345
        %v417 = vunpack.c.l.b16 %v346
        %v418 = vunpack.c.l.b16 %v347
        %v419 = vunpack.c.l.b16 %v348
        %v420 = vunpack.c.l.b16 %v349
        %v421 = vunpack.c.l.b16 %v350
        %v422 = vunpack.c.l.b16 %v351
        %v423 = vunpack.c.l.b16 %v352
        %v424 = vunpack.c.l.b16 %v353
        %v425 = vunpack.c.l.b16 %v354
        %v426 = vunpack.c.l.b16 %v355
        %v427 = vunpack.c.l.b16 %v356
        %v428 = vunpack.c.l.b16 %v357
        %v429 = vunpack.c.l.b16 %v358
        %v430 = vunpack.c.l.b16 %v359
        %v431 = vunpack.c.l.b16 %v360
        %v432 = vunpack.c.l.b16 %v361
        %v433 = vunpack.c.l.b16 %v362
        %v434 = vunpack.c.l.b16 %v363
        %v435 = vpack.c.b16 %v404, %v403
        %v436 = vpack.c.b16 %v406, %v405
        %v437 = vpack.c.b16 %v408, %v407
        %v438 = vpack.c.b16 %v410, %v409
        %v439 = vpack.c.b16 %v412, %v411
        %v440 = vpack.c.b16 %v414, %v413
        %v441 = vpack.c.b16 %v416, %v415
        %v442 = vpack.c.b16 %v418, %v417
        %v443 = vpack.c.b16 %v420, %v419
        %v444 = vpack.c.b16 %v422, %v421
        %v445 = vpack.c.b16 %v424, %v423
        %v446 = vpack.c.b16 %v426, %v425
        %v447 = vpack.c.b16 %v428, %v427
        %v448 = vpack.c.b16 %v430, %v429
        %v449 = vpack.c.b16 %v432, %v431
        %v450 = vpack.c.b16 %v434, %v433
        %467 = vmatprep.subr.bf16.mxu0 0
        %468 = vmatpush1.bf16.msra.mxu0 %v442
        %469 = vmatprep.subr.bf16.mxu0 0
        %470 = vmatpush1.bf16.msra.mxu0 %v441
        %471 = vmatprep.subr.bf16.mxu0 0
        %472 = vmatpush1.bf16.msra.mxu0 %v440
        %473 = vmatprep.subr.bf16.mxu0 0
        %474 = vmatpush1.bf16.msra.mxu0 %v439
        %475 = vmatprep.subr.bf16.mxu0 0
        %476 = vmatpush1.bf16.msra.mxu0 %v438
        %477 = vmatprep.subr.bf16.mxu0 0
        %478 = vmatpush1.bf16.msra.mxu0 %v437
        %479 = vmatprep.subr.bf16.mxu0 0
        %480 = vmatpush1.bf16.msra.mxu0 %v436
        %481 = vmatprep.subr.bf16.mxu0 0
        %482 = vmatpush1.bf16.msra.mxu0 %v435
        %483 = vmatprep.subr.bf16.mxu0 0
        %484 = vmatpush2.bf16.msra.mxu0 %v450
        %485 = vmatprep.subr.bf16.mxu0 0
        %486 = vmatpush2.bf16.msra.mxu0 %v449
        %487 = vmatprep.subr.bf16.mxu0 0
        %488 = vmatpush2.bf16.msra.mxu0 %v448
        %489 = vmatprep.subr.bf16.mxu0 0
        %490 = vmatpush2.bf16.msra.mxu0 %v447
        %491 = vmatprep.subr.bf16.mxu0 0
        %492 = vmatpush2.bf16.msra.mxu0 %v446
        %493 = vmatprep.subr.bf16.mxu0 0
        %494 = vmatpush2.bf16.msra.mxu0 %v445
        %495 = vmatprep.subr.bf16.mxu0 0
        %496 = vmatpush2.bf16.msra.mxu0 %v444
        %497 = vmatprep.subr.bf16.mxu0 0
        %498 = vmatpush2.bf16.msra.mxu0 %v443
        %499 = vmatprep.mubr.bf16.mxu0 %v319
        %500 = vmatmul.mubr.bf16.gmra.mxu0 %v318
        %v501 = vpop.f32.mrf.mxu0
        %v502 = vadd.f32 %v369, %v501
        %v503 = vpop.f32.mrf.mxu0
        %v504 = vpop.f32.mrf.mxu0
        %v505 = vadd.f32 %v369, %v504
        %v506 = vpop.f32.mrf.mxu0
        %507 = vmatprep.mubr.bf16.mxu0 %v321
        %508 = vmatmul.mubr.bf16.gmra.mxu0 %v320
        %v509 = vpop.f32.mrf.mxu0
        %v510 = vadd.f32 %v369, %v509
        %v511 = vpop.f32.mrf.mxu0
        %v512 = vpop.f32.mrf.mxu0
        %v513 = vadd.f32 %v369, %v512
        %v514 = vpop.f32.mrf.mxu0
        %515 = vmatprep.mubr.bf16.mxu0 %v323
        %516 = vmatmul.mubr.bf16.gmra.mxu0 %v322
        %v517 = vpop.f32.mrf.mxu0
        %v518 = vadd.f32 %v369, %v517
        %v519 = vpop.f32.mrf.mxu0
        %v520 = vpop.f32.mrf.mxu0
        %v521 = vadd.f32 %v369, %v520
        %v522 = vpop.f32.mrf.mxu0
        %523 = vmatprep.mubr.bf16.mxu0 %v325
        %524 = vmatmul.mubr.bf16.gmra.mxu0 %v324
        %v525 = vpop.f32.mrf.mxu0
        %v526 = vadd.f32 %v369, %v525
        %v527 = vpop.f32.mrf.mxu0
        %v528 = vpop.f32.mrf.mxu0
        %v529 = vadd.f32 %v369, %v528
        %v530 = vpop.f32.mrf.mxu0
        %531 = vmatprep.mubr.bf16.mxu0 %v327
        %532 = vmatmul.mubr.bf16.gmra.mxu0 %v326
        %v533 = vpop.f32.mrf.mxu0
        %v534 = vadd.f32 %v369, %v533
        %v535 = vpop.f32.mrf.mxu0
        %v536 = vpop.f32.mrf.mxu0
        %v537 = vadd.f32 %v369, %v536
        %v538 = vpop.f32.mrf.mxu0
        %539 = vmatprep.mubr.bf16.mxu0 %v329
        %540 = vmatmul.mubr.bf16.gmra.mxu0 %v328
        %v541 = vpop.f32.mrf.mxu0
        %v542 = vadd.f32 %v369, %v541
        %v543 = vpop.f32.mrf.mxu0
        %v544 = vpop.f32.mrf.mxu0
        %v545 = vadd.f32 %v369, %v544
        %v546 = vpop.f32.mrf.mxu0
        %547 = vmatprep.mubr.bf16.mxu0 %v331
        %548 = vmatmul.mubr.bf16.gmra.mxu0 %v330
        %v549 = vpop.f32.mrf.mxu0
        %v550 = vadd.f32 %v369, %v549
        %v551 = vpop.f32.mrf.mxu0
        %v552 = vpop.f32.mrf.mxu0
        %v553 = vpop.f32.mrf.mxu0
        %554 = vdwg.mxu0
        %v555 = vmax.f32 %v502, 0.0
        %v556 = vmax.f32 %v505, 0.0
        %v557 = vmax.f32 %v510, 0.0
        %v558 = vmax.f32 %v513, 0.0
        %v559 = vmax.f32 %v518, 0.0
        %v560 = vmax.f32 %v521, 0.0
        %v561 = vmax.f32 %v526, 0.0
        %v562 = vmax.f32 %v529, 0.0
        %v563 = vmax.f32 %v534, 0.0
        %v564 = vmax.f32 %v537, 0.0
        %v565 = vmax.f32 %v542, 0.0
        %v566 = vmax.f32 %v545, 0.0
        %v567 = vmax.f32 %v550, 0.0
        %v568 = vpack.c.bf16 %v556, %v555
        %v569 = vpack.c.bf16 %v558, %v557
        %v570 = vpack.c.bf16 %v560, %v559
        %v571 = vpack.c.bf16 %v562, %v561
        %v572 = vpack.c.bf16 %v564, %v563
        %v573 = vpack.c.bf16 %v566, %v565
        %v574 = vpack.c.bf16 %v567, %v567
        %v575 = vld [vmem:[#allocation7] sm:$0xf]
        %v576 = vld [vmem:[#allocation7 + $0x4] sm:$0xf]
        %v577 = vld [vmem:[#allocation7 + $0x8] sm:$0xf]
        %v578 = vld [vmem:[#allocation7 + $0xc] sm:$0xf]
        %v579 = vld [vmem:[#allocation7 + $0x10] sm:$0xf]
        %v580 = vld [vmem:[#allocation7 + $0x14] sm:$0xf]
        %v581 = vld [vmem:[#allocation7 + $0x18] sm:$0xf]
        %v582 = vld [vmem:[#allocation7 + $0x1c] sm:$0xf]
        %v583 = vld [vmem:[#allocation7 + $0x20] sm:$0xf]
        %v584 = vld [vmem:[#allocation7 + $0x24] sm:$0xf]
        %v585 = vld [vmem:[#allocation7 + $0x28] sm:$0xf]
        %v586 = vld [vmem:[#allocation7 + $0x2c] sm:$0xf]
        %v587 = vld [vmem:[#allocation7 + $0x30] sm:$0xf]
        %v588 = vld [vmem:[#allocation7 + $0x34] sm:$0xf]
        %v589 = vld [vmem:[#allocation7 + $0x38] sm:$0xf]
        %v590 = vld [vmem:[#allocation7 + $0x3c] sm:$0xf]
        %v591 = vld [vmem:[%s4] sm:$0x1]
        %v593 = vlaneseq
        %v594 = vshrl.u32 %v593, 7
        %v595 = vsub.s32 0, %v594
        %v596 = vrot.slane %v591, %v595
        %v614 = vunpack.c.l.b16 %v575
        %v615 = vunpack.c.l.b16 %v576
        %v616 = vunpack.c.l.b16 %v577
        %v617 = vunpack.c.l.b16 %v578
        %v618 = vunpack.c.l.b16 %v579
        %v619 = vunpack.c.l.b16 %v580
        %v620 = vunpack.c.l.b16 %v581
        %v621 = vunpack.c.l.b16 %v582
        %v622 = vunpack.c.l.b16 %v583
        %v623 = vunpack.c.l.b16 %v584
        %v624 = vunpack.c.l.b16 %v585
        %v625 = vunpack.c.l.b16 %v586
        %v626 = vunpack.c.l.b16 %v587
        %v627 = vunpack.c.l.b16 %v588
        %v628 = vunpack.c.l.b16 %v589
        %v629 = vunpack.c.l.b16 %v590
        %v630 = vpack.c.b16 %v615, %v614
        %v631 = vpack.c.b16 %v617, %v616
        %v632 = vpack.c.b16 %v619, %v618
        %v633 = vpack.c.b16 %v621, %v620
        %v634 = vpack.c.b16 %v623, %v622
        %v635 = vpack.c.b16 %v625, %v624
        %v636 = vpack.c.b16 %v627, %v626
        %v637 = vpack.c.b16 %v629, %v628
        %646 = vmatprep.subr.bf16.mxu0 0
        %647 = vmatpush1.bf16.msra.mxu0 %v637
        %648 = vmatprep.subr.bf16.mxu0 0
        %649 = vmatpush1.bf16.msra.mxu0 %v636
        %650 = vmatprep.subr.bf16.mxu0 0
        %651 = vmatpush1.bf16.msra.mxu0 %v635
        %652 = vmatprep.subr.bf16.mxu0 0
        %653 = vmatpush1.bf16.msra.mxu0 %v634
        %654 = vmatprep.subr.bf16.mxu0 0
        %655 = vmatpush1.bf16.msra.mxu0 %v633
        %656 = vmatprep.subr.bf16.mxu0 0
        %657 = vmatpush1.bf16.msra.mxu0 %v632
        %658 = vmatprep.subr.bf16.mxu0 0
        %659 = vmatpush1.bf16.msra.mxu0 %v631
        %660 = vmatprep.subr.bf16.mxu0 0
        %661 = vmatpush1.bf16.msra.mxu0 %v630
        %662 = vmatprep.subr.bf16.mxu0 0
        %663 = vmatpush2.bf16.msra.mxu0 0
        %664 = vmatprep.subr.bf16.mxu0 0
        %665 = vmatpush2.bf16.msra.mxu0 0
        %666 = vmatprep.subr.bf16.mxu0 0
        %667 = vmatpush2.bf16.msra.mxu0 0
        %668 = vmatprep.subr.bf16.mxu0 0
        %669 = vmatpush2.bf16.msra.mxu0 0
        %670 = vmatprep.subr.bf16.mxu0 0
        %671 = vmatpush2.bf16.msra.mxu0 0
        %672 = vmatprep.subr.bf16.mxu0 0
        %673 = vmatpush2.bf16.msra.mxu0 0
        %674 = vmatprep.subr.bf16.mxu0 0
        %675 = vmatpush2.bf16.msra.mxu0 0
        %676 = vmatprep.subr.bf16.mxu0 0
        %677 = vmatpush2.bf16.msra.mxu0 0
        %678 = vmatprep.mubr.bf16.mxu0 0
        %679 = vmatmul.mubr.bf16.gmra.mxu0 %v568
        %v680 = vpop.f32.mrf.mxu0
        %v681 = vadd.f32 %v596, %v680
        %v682 = vpop.f32.mrf.mxu0
        %v683 = vpop.f32.mrf.mxu0
        %v684 = vadd.f32 %v596, %v683
        %v685 = vpop.f32.mrf.mxu0
        %686 = vmatprep.mubr.bf16.mxu0 0
        %687 = vmatmul.mubr.bf16.gmra.mxu0 %v569
        %v688 = vpop.f32.mrf.mxu0
        %v689 = vadd.f32 %v596, %v688
        %v690 = vpop.f32.mrf.mxu0
        %v691 = vpop.f32.mrf.mxu0
        %v692 = vadd.f32 %v596, %v691
        %v693 = vpop.f32.mrf.mxu0
        %694 = vmatprep.mubr.bf16.mxu0 0
        %695 = vmatmul.mubr.bf16.gmra.mxu0 %v570
        %v696 = vpop.f32.mrf.mxu0
        %v697 = vadd.f32 %v596, %v696
        %v698 = vpop.f32.mrf.mxu0
        %v699 = vpop.f32.mrf.mxu0
        %v700 = vadd.f32 %v596, %v699
        %v701 = vpop.f32.mrf.mxu0
        %702 = vmatprep.mubr.bf16.mxu0 0
        %703 = vmatmul.mubr.bf16.gmra.mxu0 %v571
        %v704 = vpop.f32.mrf.mxu0
        %v705 = vadd.f32 %v596, %v704
        %v706 = vpop.f32.mrf.mxu0
        %v707 = vpop.f32.mrf.mxu0
        %v708 = vadd.f32 %v596, %v707
        %v709 = vpop.f32.mrf.mxu0
        %710 = vmatprep.mubr.bf16.mxu0 0
        %711 = vmatmul.mubr.bf16.gmra.mxu0 %v572
        %v712 = vpop.f32.mrf.mxu0
        %v713 = vadd.f32 %v596, %v712
        %v714 = vpop.f32.mrf.mxu0
        %v715 = vpop.f32.mrf.mxu0
        %v716 = vadd.f32 %v596, %v715
        %v717 = vpop.f32.mrf.mxu0
        %718 = vmatprep.mubr.bf16.mxu0 0
        %719 = vmatmul.mubr.bf16.gmra.mxu0 %v573
        %v720 = vpop.f32.mrf.mxu0
        %v721 = vadd.f32 %v596, %v720
        %v722 = vpop.f32.mrf.mxu0
        %v723 = vpop.f32.mrf.mxu0
        %v724 = vadd.f32 %v596, %v723
        %v725 = vpop.f32.mrf.mxu0
        %726 = vmatprep.mubr.bf16.mxu0 0
        %727 = vmatmul.mubr.bf16.gmra.mxu0 %v574
        %v728 = vpop.f32.mrf.mxu0
        %v729 = vadd.f32 %v596, %v728
        %v730 = vpop.f32.mrf.mxu0
        %v731 = vpop.f32.mrf.mxu0
        %v732 = vpop.f32.mrf.mxu0
        %733 = vdwg.mxu0
        %734 = vmax.xlane.f32.xlu0 %v681
        %v735 = vpop.xlane.xlu0 %734
        %736 = vmax.xlane.f32.xlu0 %v684
        %v737 = vpop.xlane.xlu0 %736
        %738 = vmax.xlane.f32.xlu0 %v689
        %v739 = vpop.xlane.xlu0 %738
        %740 = vmax.xlane.f32.xlu0 %v692
        %v741 = vpop.xlane.xlu0 %740
        %742 = vmax.xlane.f32.xlu0 %v697
        %v743 = vpop.xlane.xlu0 %742
        %744 = vmax.xlane.f32.xlu0 %v700
        %v745 = vpop.xlane.xlu0 %744
        %746 = vmax.xlane.f32.xlu0 %v705
        %v747 = vpop.xlane.xlu0 %746
        %748 = vmax.xlane.f32.xlu0 %v708
        %v749 = vpop.xlane.xlu0 %748
        %750 = vmax.xlane.f32.xlu0 %v713
        %v751 = vpop.xlane.xlu0 %750
        %752 = vmax.xlane.f32.xlu0 %v716
        %v753 = vpop.xlane.xlu0 %752
        %754 = vmax.xlane.f32.xlu0 %v721
        %v755 = vpop.xlane.xlu0 %754
        %756 = vmax.xlane.f32.xlu0 %v724
        %v757 = vpop.xlane.xlu0 %756
        %758 = vmax.xlane.f32.xlu0 %v729
        %v759 = vpop.xlane.xlu0 %758
        %v760 = vsub.f32 %v681, %v735
        %v761 = vsub.f32 %v684, %v737
        %v762 = vsub.f32 %v689, %v739
        %v763 = vsub.f32 %v692, %v741
        %v764 = vsub.f32 %v697, %v743
        %v765 = vsub.f32 %v700, %v745
        %v766 = vsub.f32 %v705, %v747
        %v767 = vsub.f32 %v708, %v749
        %v768 = vsub.f32 %v713, %v751
        %v769 = vsub.f32 %v716, %v753
        %v770 = vsub.f32 %v721, %v755
        %v771 = vsub.f32 %v724, %v757
        %v772 = vsub.f32 %v729, %v759
        %v773 = vmul.f32 %v760, 1.442695
        %v774 = vpow.pop %v773
        %v775 = vmul.f32 %v761, 1.442695
        %v776 = vpow.pop %v775
        %v777 = vmul.f32 %v762, 1.442695
        %v778 = vpow.pop %v777
        %v779 = vmul.f32 %v763, 1.442695
        %v780 = vpow.pop %v779
        %v781 = vmul.f32 %v764, 1.442695
        %v782 = vpow.pop %v781
        %v783 = vmul.f32 %v765, 1.442695
        %v784 = vpow.pop %v783
        %v785 = vmul.f32 %v766, 1.442695
        %v786 = vpow.pop %v785
        %v787 = vmul.f32 %v767, 1.442695
        %v788 = vpow.pop %v787
        %v789 = vmul.f32 %v768, 1.442695
        %v790 = vpow.pop %v789
        %v791 = vmul.f32 %v769, 1.442695
        %v792 = vpow.pop %v791
        %v793 = vmul.f32 %v770, 1.442695
        %v794 = vpow.pop %v793
        %v795 = vmul.f32 %v771, 1.442695
        %v796 = vpow.pop %v795
        %v797 = vmul.f32 %v772, 1.442695
        %v798 = vpow.pop %v797
        %799 = vadd.xlane.f32.xlu0 %v774
        %v800 = vpop.xlane.xlu0 %799
        %801 = vadd.xlane.f32.xlu0 %v776
        %v802 = vpop.xlane.xlu0 %801
        %803 = vadd.xlane.f32.xlu0 %v778
        %v804 = vpop.xlane.xlu0 %803
        %805 = vadd.xlane.f32.xlu0 %v780
        %v806 = vpop.xlane.xlu0 %805
        %807 = vadd.xlane.f32.xlu0 %v782
        %v808 = vpop.xlane.xlu0 %807
        %809 = vadd.xlane.f32.xlu0 %v784
        %v810 = vpop.xlane.xlu0 %809
        %811 = vadd.xlane.f32.xlu0 %v786
        %v812 = vpop.xlane.xlu0 %811
        %813 = vadd.xlane.f32.xlu0 %v788
        %v814 = vpop.xlane.xlu0 %813
        %815 = vadd.xlane.f32.xlu0 %v790
        %v816 = vpop.xlane.xlu0 %815
        %817 = vadd.xlane.f32.xlu0 %v792
        %v818 = vpop.xlane.xlu0 %817
        %819 = vadd.xlane.f32.xlu0 %v794
        %v820 = vpop.xlane.xlu0 %819
        %821 = vadd.xlane.f32.xlu0 %v796
        %v822 = vpop.xlane.xlu0 %821
        %823 = vadd.xlane.f32.xlu0 %v798
        %v824 = vpop.xlane.xlu0 %823
        %v825 = vrcp.pop %v800
        %v826 = vrcp.pop %v802
        %v827 = vrcp.pop %v804
        %v828 = vrcp.pop %v806
        %v829 = vrcp.pop %v808
        %v830 = vrcp.pop %v810
        %v831 = vrcp.pop %v812
        %v832 = vrcp.pop %v814
        %v833 = vrcp.pop %v816
        %v834 = vrcp.pop %v818
        %v835 = vrcp.pop %v820
        %v836 = vrcp.pop %v822
        %v837 = vrcp.pop %v824
        %v838 = vmul.f32 %v774, %v825
        %v839 = vmul.f32 %v776, %v826
        %v840 = vmul.f32 %v778, %v827
        %v841 = vmul.f32 %v780, %v828
        %v842 = vmul.f32 %v782, %v829
        %v843 = vmul.f32 %v784, %v830
        %v844 = vmul.f32 %v786, %v831
        %v845 = vmul.f32 %v788, %v832
        %v846 = vmul.f32 %v790, %v833
        %v847 = vmul.f32 %v792, %v834
        %v848 = vmul.f32 %v794, %v835
        %v849 = vmul.f32 %v796, %v836
        %v850 = vmul.f32 %v798, %v837
        %v851 = vpack.c.bf16 %v839, %v838
        %v852 = vpack.c.bf16 %v841, %v840
        %v853 = vpack.c.bf16 %v843, %v842
        %v854 = vpack.c.bf16 %v845, %v844
        %v855 = vpack.c.bf16 %v847, %v846
        %v856 = vpack.c.bf16 %v849, %v848
        %v857 = vpack.c.bf16 %v850, %v850
        %v865 = vunpack.c.l.b16 %v851
        %v866 = vunpack.c.h.b16 %v851
        %v867 = vunpack.c.l.b16 %v852
        %v868 = vunpack.c.h.b16 %v852
        %v869 = vunpack.c.l.b16 %v853
        %v870 = vunpack.c.h.b16 %v853
        %v871 = vunpack.c.l.b16 %v854
        %v872 = vunpack.c.h.b16 %v854
        %v873 = vunpack.c.l.b16 %v855
        %v874 = vunpack.c.h.b16 %v855
        %v875 = vunpack.c.l.b16 %v856
        %v876 = vunpack.c.h.b16 %v856
        %v877 = vunpack.c.l.b16 %v857
        %v878 = vpack.c.b16 %v865, %v865
        %v879 = vpack.c.b16 %v866, %v866
        %v880 = vpack.c.b16 %v867, %v867
        %v881 = vpack.c.b16 %v868, %v868
        %v882 = vpack.c.b16 %v869, %v869
        %v883 = vpack.c.b16 %v870, %v870
        %v884 = vpack.c.b16 %v871, %v871
        %v885 = vpack.c.b16 %v872, %v872
        %v886 = vpack.c.b16 %v873, %v873
        %v887 = vpack.c.b16 %v874, %v874
        %v888 = vpack.c.b16 %v875, %v875
        %v889 = vpack.c.b16 %v876, %v876
        %v890 = vpack.c.b16 %v877, %v877
        %904 = vst [vmem:[%s279] sm:$0xf] %v878
        %905 = vst [vmem:[%s279 + $0x4] sm:$0xf] %v879
        %906 = vst [vmem:[%s279 + $0x8] sm:$0xf] %v880
        %907 = vst [vmem:[%s279 + $0xc] sm:$0xf] %v881
        %908 = vst [vmem:[%s279 + $0x10] sm:$0xf] %v882
        %909 = vst [vmem:[%s279 + $0x14] sm:$0xf] %v883
        %910 = vst [vmem:[%s279 + $0x18] sm:$0xf] %v884
        %911 = vst [vmem:[%s279 + $0x1c] sm:$0xf] %v885
        %912 = vst [vmem:[%s279 + $0x20] sm:$0xf] %v886
        %913 = vst [vmem:[%s279 + $0x24] sm:$0xf] %v887
        %914 = vst [vmem:[%s279 + $0x28] sm:$0xf] %v888
        %915 = vst [vmem:[%s279 + $0x2c] sm:$0xf] %v889
        %916 = vst [vmem:[%s279 + $0x30] sm:$0xf] %v890
        %s917 = sand.u32 %s141, 1
        %s918 = scalar_lea.sflag [#allocation4], %s917
        %s919 = sand.u32 %s141, 1
        %s920 = smul.addr %s919, 52
        %s921 = scalar_lea.vmem [#allocation8], %s920
        // Predicated region
        $region53: #{tpu_custom_call.1} parent=39 // pred_check
          %p922 = pneg %p151
        $region54: #{tpu_custom_call.1} parent=39 // pred_check_branch
          %924 = sbr.rel (%p922) target = $region56
        $region55: #{tpu_custom_call.1} parent=39 // pred_region
          %s925 = smul.u32 13, %s23
          %s926 = ssub.s32 25, %s925
          %p927 = scmp.lt.s32.totalorder %s926, 13
          %s928 = scalar_select %p927, %s926, 13
          %s929 = smul.u32 64, %s928
          %s931 = ssub.s32 832, %s929
          %932 = vsyncadd %s918, %s931
          %p933 = scmp.ne.s32.totalorder 0, %s929
          %s934 = smul.addr %s925, 64
          %s935 = scalar_lea.hbm %s5, %s934
          %s936 = smul.u32 4, %s928
          %s937 = sshll.u32 %s921, 4
          %s938 = int_to_ptr.vmem [resolvable:$true] %s937
          %s939 = sshll.u32 %s936, 4
          %943 = dma.vmem_to_hbm [thread:$0]  (%p933), %s938, %s939, %s935, %s918, 64, 64, 4
        $region56: #{tpu_custom_call.1} parent=39 // pred_fallthru
          _
      $region40: #{tpu_custom_call.1} parent=5 // pred_fallthru
        _
      %p944 = scmp.le.s32.totalorder 2, %s18
      // Predicated region
      $region57: #{tpu_custom_call.1} parent=5 // pred_check
        %p945 = pneg %p944
      $region58: #{tpu_custom_call.1} parent=5 // pred_check_branch
        %947 = sbr.rel (%p945) target = $region60
      $region59: #{tpu_custom_call.1} parent=5 // pred_region
        %s948 = ssub.s32 %s18, 2
        // Predicated region
        $region61: #{tpu_custom_call.1} parent=59 // pred_check
          %p949 = pneg %p157
        $region62: #{tpu_custom_call.1} parent=59 // pred_check_branch
          %951 = sbr.rel (%p949) target = $region64
        $region63: #{tpu_custom_call.1} parent=59 // pred_region
          %s952 = sand.u32 %s142, 1
          %s953 = scalar_lea.sflag [#allocation4], %s952
          %s954 = sand.u32 %s142, 1
          %s955 = smul.addr %s954, 52
          %s956 = scalar_lea.vmem [#allocation8], %s955
          %957 = dma.done %s953, 832
        $region64: #{tpu_custom_call.1} parent=59 // pred_fallthru
          _
      $region60: #{tpu_custom_call.1} parent=5 // pred_fallthru
        _
    $region6: #{tpu_custom_call.1} parent=1 // loop_footer
      %s22 = sadd.s32 1, %s18
    $region7: #{tpu_custom_call.1} parent=1 // loop_footer_branch
      %17 = sbr.rel target = $region3
    $region8: #{tpu_custom_call.1} parent=1 // loop_exit
      _
    %958 = vsyncpa [#allocation3], 1
    %s959 = scalar_lea.sflag [#allocation3], 1
    %960 = vsyncpa %s959, 1
    %961 = vsyncpa [#allocation6], 1
    %962 = vsyncpa [#allocation4], 1
    %s963 = scalar_lea.sflag [#allocation4], 1
    %964 = vsyncpa %s963, 1

</llo_original>
